<compile_context>
chip_gen: v5e
topology: v5e:2x2
jax: 0.10.0
libtpu: 0.0.40
codegen_flags: <defaults>
</compile_context>

<pallas_src>
import numpy as np
import jax
import jax.numpy as jnp
from jax.experimental import pallas as pl
from jax.experimental.pallas import tpu as pltpu

# ----- config (mirrors the pointer-generator `config` module, toy sizes) -----
HIDDEN_DIM = 32
TRUNC_NORM_INIT_STD = 1e-4
LANES = 128                     # padded output width (full vreg lane dim)


# ----------------------------- Pallas kernel ------------------------------
def _reduce_state_kernel(h_ref,   # (2, B, H) f32 : bidirectional final h
                         c_ref,   # (2, B, H) f32 : bidirectional final c
                         w_ref,   # (4H, 128) f32 : block-diag [[W_h^T,0],[0,W_c^T]], cols 2H.. zero
                         b_ref,   # (1, 128) f32  : [b_h | b_c | 0]
                         o_ref):  # OUT (B, 128)  : [relu(reduce_h(h_in)) | relu(reduce_c(c_in)) | 0]
    H = h_ref.shape[-1]
    # Four K=H partial dots against row-blocks of the fused weight; this is
    # exactly  concat([h0,h1,c0,c1], -1) @ W  without any lane concatenation.
    y = jnp.dot(h_ref[0], w_ref[0 * H:1 * H, :], preferred_element_type=jnp.float32)
    y += jnp.dot(h_ref[1], w_ref[1 * H:2 * H, :], preferred_element_type=jnp.float32)
    y += jnp.dot(c_ref[0], w_ref[2 * H:3 * H, :], preferred_element_type=jnp.float32)
    y += jnp.dot(c_ref[1], w_ref[3 * H:4 * H, :], preferred_element_type=jnp.float32)
    o_ref[...] = jnp.maximum(y + b_ref[...], 0.0)     # lane-dense (B,128) store


# ------------------------------- wrapper ----------------------------------
def reduce_state_pallas(hidden, params):
    """hidden = (h, c), each (2, B, H). Returns ((1, B, H), (1, B, H))."""
    h, c = hidden
    _, B, H = h.shape

    vmem = pl.BlockSpec(memory_space=pltpu.MemorySpace.VMEM)
    out = pl.pallas_call(
        _reduce_state_kernel,
        out_shape=jax.ShapeDtypeStruct((B, LANES), jnp.float32),
        in_specs=[vmem, vmem, vmem, vmem],
        out_specs=vmem,
    )(h, c, params["w_fused"], params["b_fused"])

    # TODO(synk): fold these slices / the unsqueeze into the consumer kernel.
    h_red = out[:, :H][None]              # (1, B, H)
    c_red = out[:, H:2 * H][None]         # (1, B, H)
    return h_red, c_red


# -------------------------- deterministic params ---------------------------
def init_params(key):
    """init_linear_wt: weight & bias ~ N(0, trunc_norm_init_std)."""
    H = HIDDEN_DIM
    ks = jax.random.split(key, 4)
    std = TRUNC_NORM_INIT_STD
    reduce_h_w = std * jax.random.normal(ks[0], (H, 2 * H), jnp.float32)   # (out, in)
    reduce_h_b = std * jax.random.normal(ks[1], (H,), jnp.float32)
    reduce_c_w = std * jax.random.normal(ks[2], (H, 2 * H), jnp.float32)
    reduce_c_b = std * jax.random.normal(ks[3], (H,), jnp.float32)

    # Fused block-diagonal weight, padded to a full 128-lane output slab
    # (built once at init — zero per-call cost):
    #   rows 0:2H , cols 0:H   = W_h^T
    #   rows 2H:4H, cols H:2H  = W_c^T
    #   cols 2H:128            = 0 (lane padding for unmasked stores)
    w_fused = jnp.zeros((4 * H, LANES), jnp.float32)
    w_fused = w_fused.at[:2 * H, :H].set(reduce_h_w.T)
    w_fused = w_fused.at[2 * H:, H:2 * H].set(reduce_c_w.T)

    b_fused = jnp.zeros((1, LANES), jnp.float32)
    b_fused = b_fused.at[0, :H].set(reduce_h_b)
    b_fused = b_fused.at[0, H:2 * H].set(reduce_c_b)

    return {
        "reduce_h_w": reduce_h_w, "reduce_h_b": reduce_h_b,
        "reduce_c_w": reduce_c_w, "reduce_c_b": reduce_c_b,
        "w_fused": w_fused, "b_fused": b_fused,
    }


# ---------------------- pure-JAX reference (for check) ---------------------
def reduce_state_reference(hidden, params):
    h, c = hidden
    h_in = jnp.concatenate([h[0], h[1]], axis=-1)               # (B, 2H)
    c_in = jnp.concatenate([c[0], c[1]], axis=-1)               # (B, 2H)
    h_red = jax.nn.relu(h_in @ params["reduce_h_w"].T + params["reduce_h_b"])
    c_red = jax.nn.relu(c_in @ params["reduce_c_w"].T + params["reduce_c_b"])
    return h_red[None], c_red[None]


# ----------------------------------- main -----------------------------------
if __name__ == "__main__":
    B, H = 2, HIDDEN_DIM
    key = jax.random.PRNGKey(0)
    kp, kh, kc = jax.random.split(key, 3)
    params = init_params(kp)

    # bidirectional final states: (num_directions=2, B, H)
    h = jax.random.normal(kh, (2, B, H), jnp.float32)
    c = jax.random.normal(kc, (2, B, H), jnp.float32)

    h_red, c_red = reduce_state_pallas((h, c), params)
    jax.block_until_ready((h_red, c_red))

    h_ref, c_ref = reduce_state_reference((h, c), params)
    np.testing.assert_allclose(np.asarray(h_red), np.asarray(h_ref),
                               rtol=1e-5, atol=1e-6)
    np.testing.assert_allclose(np.asarray(c_red), np.asarray(c_ref),
                               rtol=1e-5, atol=1e-6)
    assert h_red.shape == (1, B, H) and c_red.shape == (1, B, H)

    print("KERNEL_OK")
</pallas_src>

<mosaic_0001>
module attributes {stable_mosaic.version = 11 : i64} {
  func.func @_reduce_state_kernel(%arg0: memref<2x2x32xf32, #tpu.memory_space<vmem>>, %arg1: memref<2x2x32xf32, #tpu.memory_space<vmem>>, %arg2: memref<128x128xf32, #tpu.memory_space<vmem>>, %arg3: memref<1x128xf32, #tpu.memory_space<vmem>>, %arg4: memref<2x128xf32, #tpu.memory_space<vmem>>) attributes {dimension_semantics = [], scalar_prefetch = 0 : i64, scratch_operands = 0 : i64, tpu.core_type = #tpu.core_type<tc>} {
    %c0 = arith.constant 0 : index
    %c0_0 = arith.constant 0 : index
    %c0_1 = arith.constant 0 : index
    %0 = vector.load %arg0[%c0, %c0_0, %c0_1] : memref<2x2x32xf32, #tpu.memory_space<vmem>>, vector<1x2x32xf32>
    %1 = vector.shape_cast %0 : vector<1x2x32xf32> to vector<2x32xf32>
    %c0_2 = arith.constant 0 : index
    %c0_3 = arith.constant 0 : index
    %2 = vector.load %arg2[%c0_2, %c0_3] : memref<128x128xf32, #tpu.memory_space<vmem>>, vector<32x128xf32>
    %cst = arith.constant dense<0.000000e+00> : vector<2x128xf32>
    %3 = tpu.matmul %1, %2, %cst {dimension_numbers = #tpu.dot_dimension_numbers<[1], [0], [0], [1], [0, 0, 1, 1], [], []>} : vector<2x32xf32>, vector<32x128xf32>, vector<2x128xf32> -> vector<2x128xf32>
    %c1 = arith.constant 1 : index
    %c0_4 = arith.constant 0 : index
    %c0_5 = arith.constant 0 : index
    %4 = vector.load %arg0[%c1, %c0_4, %c0_5] : memref<2x2x32xf32, #tpu.memory_space<vmem>>, vector<1x2x32xf32>
    %5 = vector.shape_cast %4 : vector<1x2x32xf32> to vector<2x32xf32>
    %c32 = arith.constant 32 : index
    %c0_6 = arith.constant 0 : index
    %6 = vector.load %arg2[%c32, %c0_6] : memref<128x128xf32, #tpu.memory_space<vmem>>, vector<32x128xf32>
    %cst_7 = arith.constant dense<0.000000e+00> : vector<2x128xf32>
    %7 = tpu.matmul %5, %6, %cst_7 {dimension_numbers = #tpu.dot_dimension_numbers<[1], [0], [0], [1], [0, 0, 1, 1], [], []>} : vector<2x32xf32>, vector<32x128xf32>, vector<2x128xf32> -> vector<2x128xf32>
    %8 = arith.addf %3, %7 : vector<2x128xf32>
    %c0_8 = arith.constant 0 : index
    %c0_9 = arith.constant 0 : index
    %c0_10 = arith.constant 0 : index
    %9 = vector.load %arg1[%c0_8, %c0_9, %c0_10] : memref<2x2x32xf32, #tpu.memory_space<vmem>>, vector<1x2x32xf32>
    %10 = vector.shape_cast %9 : vector<1x2x32xf32> to vector<2x32xf32>
    %c64 = arith.constant 64 : index
    %c0_11 = arith.constant 0 : index
    %11 = vector.load %arg2[%c64, %c0_11] : memref<128x128xf32, #tpu.memory_space<vmem>>, vector<32x128xf32>
    %cst_12 = arith.constant dense<0.000000e+00> : vector<2x128xf32>
    %12 = tpu.matmul %10, %11, %cst_12 {dimension_numbers = #tpu.dot_dimension_numbers<[1], [0], [0], [1], [0, 0, 1, 1], [], []>} : vector<2x32xf32>, vector<32x128xf32>, vector<2x128xf32> -> vector<2x128xf32>
    %13 = arith.addf %8, %12 : vector<2x128xf32>
    %c1_13 = arith.constant 1 : index
    %c0_14 = arith.constant 0 : index
    %c0_15 = arith.constant 0 : index
    %14 = vector.load %arg1[%c1_13, %c0_14, %c0_15] : memref<2x2x32xf32, #tpu.memory_space<vmem>>, vector<1x2x32xf32>
    %15 = vector.shape_cast %14 : vector<1x2x32xf32> to vector<2x32xf32>
    %c96 = arith.constant 96 : index
    %c0_16 = arith.constant 0 : index
    %16 = vector.load %arg2[%c96, %c0_16] : memref<128x128xf32, #tpu.memory_space<vmem>>, vector<32x128xf32>
    %cst_17 = arith.constant dense<0.000000e+00> : vector<2x128xf32>
    %17 = tpu.matmul %15, %16, %cst_17 {dimension_numbers = #tpu.dot_dimension_numbers<[1], [0], [0], [1], [0, 0, 1, 1], [], []>} : vector<2x32xf32>, vector<32x128xf32>, vector<2x128xf32> -> vector<2x128xf32>
    %18 = arith.addf %13, %17 : vector<2x128xf32>
    %c0_18 = arith.constant 0 : index
    %c0_19 = arith.constant 0 : index
    %19 = vector.load %arg3[%c0_18, %c0_19] : memref<1x128xf32, #tpu.memory_space<vmem>>, vector<1x128xf32>
    %20 = vector.broadcast %19 : vector<1x128xf32> to vector<2x128xf32>
    %21 = arith.addf %18, %20 : vector<2x128xf32>
    %cst_20 = arith.constant 0.000000e+00 : f32
    %22 = vector.broadcast %cst_20 : f32 to vector<2x128xf32>
    %23 = arith.maximumf %21, %22 : vector<2x128xf32>
    %c0_21 = arith.constant 0 : index
    %c0_22 = arith.constant 0 : index
    %24 = vector.load %arg4[%c0_21, %c0_22] : memref<2x128xf32, #tpu.memory_space<vmem>>, vector<2x128xf32>
    tpu.vector_store %arg4[%c0_21, %c0_22], %23 {strides = array<i32>} : memref<2x128xf32, #tpu.memory_space<vmem>>, vector<2x128xf32>,
    return
  }
}

</mosaic_0001>

<llo_original>
// kernel: tpu_custom_call.1
$region0: #{tpu_custom_call.1}
  #allocation0 [shape = 'u32[]', space=smem, size = 0x4, offset = 0x4, fixed_abs, tag = 'smem constant byte address 0x4 - core index']
  #allocation1 [shape = 'u32[72,128]{1,0:T(1,128)}', space=vmem, size = 0x9000, scoped, tag = 'internal scratch']
  %s0 = inlined_call_operand.hbm [shape: f32[2,2,32], index: 0, kind: input, shape index: {}]
  %s1 = inlined_call_operand.hbm [shape: f32[2,2,32], index: 1, kind: input, shape index: {}]
  %s2 = inlined_call_operand.hbm [shape: f32[128,128], index: 2, kind: input, shape index: {}]
  %s3 = inlined_call_operand.vmem [shape: f32[1,128], index: 3, kind: input, shape index: {}]
  %s4 = inlined_call_operand.hbm [shape: f32[2,128], index: 4, kind: output, shape index: {}]
  %s5 = sld [smem:[#allocation0]]
  $region38: #{tpu_custom_call.1} parent=0
    _
  %s7 = ssub.s32 1, %s5
  %s8 = scalar_select 0, %s7, %s5
  $region1: #{tpu_custom_call.1} parent=0
    #allocation2 [shape = 'u8[2048]{0}', space=vmem, size = 0x800, scoped, tag = 'input window, operand 0, single buffered']
    #allocation3 [shape = 's32[1]{0}', space=sflag, size = 0x4, scoped, tag = 'scoped memory for tpu_custom_call.1']
    #allocation4 [shape = 's32[1]{0}', space=sflag, size = 0x4, scoped, tag = 'scoped memory for tpu_custom_call.1']
    #allocation5 [shape = 'u8[2048]{0}', space=vmem, size = 0x800, scoped, tag = 'input window, operand 1, single buffered']
    #allocation6 [shape = 's32[1]{0}', space=sflag, size = 0x4, scoped, tag = 'scoped memory for tpu_custom_call.1']
    #allocation7 [shape = 'u8[65536]{0}', space=vmem, size = 0x10000, scoped, tag = 'input window, operand 2, single buffered']
    #allocation8 [shape = 'u8[1024]{0}', space=vmem, size = 0x400, scoped, tag = 'output window, operand 0, single buffered']
    %9 = vsyncpa [#allocation3], 0
    %10 = vsyncpa [#allocation6], 0
    %11 = vsyncpa [#allocation4], 0
    // Predicated region
    $region2: #{tpu_custom_call.1} parent=1 // pred_check
      _
    $region3: #{tpu_custom_call.1} parent=1 // pred_check_branch
      %13 = sbr.rel (0) target = $region5
    $region4: #{tpu_custom_call.1} parent=1 // pred_region
      %15 = vsyncadd [#allocation3], 0
      %s16 = sshll.u32 %s0, 4
      %s17 = int_to_ptr.hbm [resolvable:$true] %s16
      %s18 = sshll.u32 [#allocation2], 4
      %s19 = int_to_ptr.vmem [resolvable:$true] %s18
      %24 = dma.hbm_to_vmem [thread:$0]  %s17, 64, %s19, [#allocation3], 32, 32, 2
    $region5: #{tpu_custom_call.1} parent=1 // pred_fallthru
      _
    // Predicated region
    $region6: #{tpu_custom_call.1} parent=1 // pred_check
      _
    $region7: #{tpu_custom_call.1} parent=1 // pred_check_branch
      %26 = sbr.rel (0) target = $region9
    $region8: #{tpu_custom_call.1} parent=1 // pred_region
      %28 = vsyncadd [#allocation6], 0
      %s29 = sshll.u32 %s1, 4
      %s30 = int_to_ptr.hbm [resolvable:$true] %s29
      %s31 = sshll.u32 [#allocation5], 4
      %s32 = int_to_ptr.vmem [resolvable:$true] %s31
      %37 = dma.hbm_to_vmem [thread:$0]  %s30, 64, %s32, [#allocation6], 32, 32, 2
    $region9: #{tpu_custom_call.1} parent=1 // pred_fallthru
      _
    // Predicated region
    $region10: #{tpu_custom_call.1} parent=1 // pred_check
      _
    $region11: #{tpu_custom_call.1} parent=1 // pred_check_branch
      %39 = sbr.rel (0) target = $region13
    $region12: #{tpu_custom_call.1} parent=1 // pred_region
      %41 = vsyncadd [#allocation6], 0
      %s42 = sshll.u32 %s2, 4
      %s43 = int_to_ptr.hbm [resolvable:$true] %s42
      %s44 = sshll.u32 [#allocation7], 4
      %s45 = int_to_ptr.vmem [resolvable:$true] %s44
      %50 = dma.hbm_to_vmem [thread:$0]  %s43, 2048, %s45, [#allocation6], 128, 128, 8
    $region13: #{tpu_custom_call.1} parent=1 // pred_fallthru
      _
    // Predicated region
    $region14: #{tpu_custom_call.1} parent=1 // pred_check
      _
    $region15: #{tpu_custom_call.1} parent=1 // pred_check_branch
      %52 = sbr.rel (0) target = $region17
    $region16: #{tpu_custom_call.1} parent=1 // pred_region
      _
    $region17: #{tpu_custom_call.1} parent=1 // pred_fallthru
      _
    // Predicated region
    $region18: #{tpu_custom_call.1} parent=1 // pred_check
      _
    $region19: #{tpu_custom_call.1} parent=1 // pred_check_branch
      %54 = sbr.rel (0) target = $region21
    $region20: #{tpu_custom_call.1} parent=1 // pred_region
      %56 = dma.done [#allocation3], 64
    $region21: #{tpu_custom_call.1} parent=1 // pred_fallthru
      _
    // Predicated region
    $region22: #{tpu_custom_call.1} parent=1 // pred_check
      _
    $region23: #{tpu_custom_call.1} parent=1 // pred_check_branch
      %58 = sbr.rel (0) target = $region25
    $region24: #{tpu_custom_call.1} parent=1 // pred_region
      %60 = dma.done [#allocation6], 64
    $region25: #{tpu_custom_call.1} parent=1 // pred_fallthru
      _
    // Predicated region
    $region26: #{tpu_custom_call.1} parent=1 // pred_check
      _
    $region27: #{tpu_custom_call.1} parent=1 // pred_check_branch
      %62 = sbr.rel (0) target = $region29
    $region28: #{tpu_custom_call.1} parent=1 // pred_region
      %64 = dma.done [#allocation6], 2048
    $region29: #{tpu_custom_call.1} parent=1 // pred_fallthru
      _
    %v65 = vld [vmem:[#allocation2] sm:$0x3]
    %v66 = vld [vmem:[#allocation7] sm:$0xff]
    %v67 = vld [vmem:[#allocation7 + $0x8] sm:$0xff]
    %v68 = vld [vmem:[#allocation7 + $0x10] sm:$0xff]
    %v69 = vld [vmem:[#allocation7 + $0x18] sm:$0xff]
    %s70 = scalar_lea.vmem [#allocation2], 2
    %v71 = vld [vmem:[%s70] sm:$0x3]
    %v72 = vld [vmem:[#allocation7 + $0x20] sm:$0xff]
    %v73 = vld [vmem:[#allocation7 + $0x28] sm:$0xff]
    %v74 = vld [vmem:[#allocation7 + $0x30] sm:$0xff]
    %v75 = vld [vmem:[#allocation7 + $0x38] sm:$0xff]
    %vm76 = vcmask 261120
    %v78 = vsel %vm76, %v71, 0
    %80 = vmatpush.msra.mxu0 0.0
    %81 = vmatpush.msra.mxu0 0.0
    %82 = vmatpush.msra.mxu0 0.0
    %83 = vmatpush.msra.mxu0 0.0
    %84 = vmatpush.msra.mxu0 0.0
    %85 = vmatpush.msra.mxu0 0.0
    %86 = vmatpush.msra.mxu0 0.0
    %87 = vmatpush.msra.mxu0 0.0
    %88 = vmatpush.msra.mxu0 0.0
    %89 = vmatpush.msra.mxu0 0.0
    %90 = vmatpush.msra.mxu0 0.0
    %91 = vmatpush.msra.mxu0 0.0
    %92 = vmatpush.msra.mxu0 %v75
    %93 = vmatpush.msra.mxu0 %v74
    %94 = vmatpush.msra.mxu0 %v73
    %95 = vmatpush.msra.mxu0 %v72
    %96 = vmatmul.f32.gmra.mxu0 %v78
    %v97 = vpop.f32.mrf.mxu0
    %v98 = vadd.f32 0.0, %v97
    %99 = vdwg.mxu0
    %v101 = vsel %vm76, %v65, 0
    %103 = vmatpush.msra.mxu0 0.0
    %104 = vmatpush.msra.mxu0 0.0
    %105 = vmatpush.msra.mxu0 0.0
    %106 = vmatpush.msra.mxu0 0.0
    %107 = vmatpush.msra.mxu0 0.0
    %108 = vmatpush.msra.mxu0 0.0
    %109 = vmatpush.msra.mxu0 0.0
    %110 = vmatpush.msra.mxu0 0.0
    %111 = vmatpush.msra.mxu0 0.0
    %112 = vmatpush.msra.mxu0 0.0
    %113 = vmatpush.msra.mxu0 0.0
    %114 = vmatpush.msra.mxu0 0.0
    %115 = vmatpush.msra.mxu0 %v69
    %116 = vmatpush.msra.mxu0 %v68
    %117 = vmatpush.msra.mxu0 %v67
    %118 = vmatpush.msra.mxu0 %v66
    %119 = vmatmul.f32.gmra.mxu0 %v101
    %v120 = vpop.f32.mrf.mxu0
    %v121 = vadd.f32 %v98, %v120
    %122 = vdwg.mxu0
    %v123 = vld [vmem:[#allocation5] sm:$0x3]
    %v124 = vld [vmem:[#allocation7 + $0x40] sm:$0xff]
    %v125 = vld [vmem:[#allocation7 + $0x48] sm:$0xff]
    %v126 = vld [vmem:[#allocation7 + $0x50] sm:$0xff]
    %v127 = vld [vmem:[#allocation7 + $0x58] sm:$0xff]
    %v129 = vsel %vm76, %v123, 0
    %131 = vmatpush.msra.mxu0 0.0
    %132 = vmatpush.msra.mxu0 0.0
    %133 = vmatpush.msra.mxu0 0.0
    %134 = vmatpush.msra.mxu0 0.0
    %135 = vmatpush.msra.mxu0 0.0
    %136 = vmatpush.msra.mxu0 0.0
    %137 = vmatpush.msra.mxu0 0.0
    %138 = vmatpush.msra.mxu0 0.0
    %139 = vmatpush.msra.mxu0 0.0
    %140 = vmatpush.msra.mxu0 0.0
    %141 = vmatpush.msra.mxu0 0.0
    %142 = vmatpush.msra.mxu0 0.0
    %143 = vmatpush.msra.mxu0 %v127
    %144 = vmatpush.msra.mxu0 %v126
    %145 = vmatpush.msra.mxu0 %v125
    %146 = vmatpush.msra.mxu0 %v124
    %147 = vmatmul.f32.gmra.mxu0 %v129
    %v148 = vpop.f32.mrf.mxu0
    %v149 = vadd.f32 0.0, %v148
    %150 = vdwg.mxu0
    %v151 = vadd.f32 %v121, %v149
    %s152 = scalar_lea.vmem [#allocation5], 2
    %v153 = vld [vmem:[%s152] sm:$0x3]
    %v154 = vld [vmem:[#allocation7 + $0x60] sm:$0xff]
    %v155 = vld [vmem:[#allocation7 + $0x68] sm:$0xff]
    %v156 = vld [vmem:[#allocation7 + $0x70] sm:$0xff]
    %v157 = vld [vmem:[#allocation7 + $0x78] sm:$0xff]
    %v159 = vsel %vm76, %v153, 0
    %161 = vmatpush.msra.mxu0 0.0
    %162 = vmatpush.msra.mxu0 0.0
    %163 = vmatpush.msra.mxu0 0.0
    %164 = vmatpush.msra.mxu0 0.0
    %165 = vmatpush.msra.mxu0 0.0
    %166 = vmatpush.msra.mxu0 0.0
    %167 = vmatpush.msra.mxu0 0.0
    %168 = vmatpush.msra.mxu0 0.0
    %169 = vmatpush.msra.mxu0 0.0
    %170 = vmatpush.msra.mxu0 0.0
    %171 = vmatpush.msra.mxu0 0.0
    %172 = vmatpush.msra.mxu0 0.0
    %173 = vmatpush.msra.mxu0 %v157
    %174 = vmatpush.msra.mxu0 %v156
    %175 = vmatpush.msra.mxu0 %v155
    %176 = vmatpush.msra.mxu0 %v154
    %177 = vmatmul.f32.gmra.mxu0 %v159
    %v178 = vpop.f32.mrf.mxu0
    %v179 = vadd.f32 0.0, %v178
    %180 = vdwg.mxu0
    %v181 = vadd.f32 %v151, %v179
    %v182 = vld [vmem:[%s3] sm:$0x1]
    %v184 = vperm.slane %v182, 0
    %v186 = vadd.f32 %v181, %v184
    %v187 = vmax.f32 %v186, 0.0
    %188 = vst [vmem:[#allocation8] sm:$0x3] %v187
    // Predicated region
    $region30: #{tpu_custom_call.1} parent=1 // pred_check
      _
    $region31: #{tpu_custom_call.1} parent=1 // pred_check_branch
      %190 = sbr.rel (0) target = $region33
    $region32: #{tpu_custom_call.1} parent=1 // pred_region
      %192 = vsyncadd [#allocation4], 0
      %s194 = sshll.u32 [#allocation8], 4
      %s195 = int_to_ptr.vmem [resolvable:$true] %s194
      %s196 = sshll.u32 %s4, 4
      %s197 = int_to_ptr.hbm [resolvable:$true] %s196
      %199 = dma.vmem_to_hbm [thread:$0]  %s195, 32, %s197, [#allocation4]
    $region33: #{tpu_custom_call.1} parent=1 // pred_fallthru
      _
    // Predicated region
    $region34: #{tpu_custom_call.1} parent=1 // pred_check
      _
    $region35: #{tpu_custom_call.1} parent=1 // pred_check_branch
      %201 = sbr.rel (0) target = $region37
    $region36: #{tpu_custom_call.1} parent=1 // pred_region
      %203 = dma.done [#allocation4], 32
    $region37: #{tpu_custom_call.1} parent=1 // pred_fallthru
      _
    %204 = vsyncpa [#allocation3], 1
    %205 = vsyncpa [#allocation6], 1
    %206 = vsyncpa [#allocation4], 1

</llo_original>
